<compile_context>
chip_gen: v7x
topology: tpu7x:2x2x1
jax: 0.10.0
libtpu: 0.0.40
codegen_flags: <defaults>
</compile_context>

<pallas_src>
import functools
import math

import jax
import jax.numpy as jnp
from jax import lax
from jax.experimental import pallas as pl
from jax.experimental.pallas import tpu as pltpu


# ---------------------------------------------------------------------------
# VMEM budget / tiling helpers
# ---------------------------------------------------------------------------
def _vmem_budget_bytes():
    """Per-generation tile budget (stays inside the default scoped-VMEM
    limits: 16 MiB on v5e, 32 MiB on v6e/v7x; v7x has only 64 MiB physical)."""
    try:
        kind = jax.devices()[0].device_kind.lower()
    except Exception:
        kind = ""
    if "v5" in kind:
        return 12 * 1024 * 1024
    if "v6" in kind:
        return 24 * 1024 * 1024
    if "v7" in kind:
        return 20 * 1024 * 1024
    return 12 * 1024 * 1024


def _pick_hw_tile(hw, n_batch, bytes_per_lane):
    """Largest multiple-of-128 tile along the flattened-spatial (lane) axis.

    `bytes_per_lane` counts every fp32 input+output channel the kernel touches
    per lane; the budget is divided by 3 to cover double-buffering (2x) plus
    the in-kernel fp32 temporaries (~1x) the perf review called out."""
    if hw % 128 != 0:
        # TODO(synk): pad HW to a multiple of 128 for huge odd-sized images;
        # at MAB-sized feature maps the full extent comfortably fits VMEM.
        return hw
    budget = _vmem_budget_bytes() // 3
    cap = max(128, (budget // max(bytes_per_lane, 1)) // 128 * 128)
    tile = 128
    t = min(hw, cap)
    while t >= 128:
        if hw % t == 0:
            tile = t
            break
        t -= 128
    # Keep >= 2 grid blocks so the v7x megacore has work for both TensorCores.
    if n_batch * (hw // tile) < 2:
        half = tile // 2
        if half >= 128 and half % 128 == 0 and hw % half == 0:
            tile = half
    return tile


def _mac(w, x):
    """y = w @ x.  MAB's contractions are tiny (Cin <= 12): an unrolled VPU
    broadcast-MAC beats a <5%-utilized MXU matmul and avoids result-FIFO
    latency.  Larger contractions fall back to a default-precision dot."""
    cout, cin = w.shape
    if cin > 16:
        return jnp.dot(w, x, preferred_element_type=jnp.float32)
    acc = w[:, 0:1] * x[0:1, :]
    for c in range(1, cin):
        acc = acc + w[:, c:c + 1] * x[c:c + 1, :]
    return acc


# ---------------------------------------------------------------------------
# Kernel 1: fused LayerNorm(channels_first) + 1x1 conv, split outputs.
#   x block: (1, C, T) with C on sublanes, spatial T on lanes; reduce over C;
#   each chunk of the conv output is written as its own lane-dense output.
# ---------------------------------------------------------------------------
def _ln_pw_kernel(x_ref, lw_ref, lb_ref, w_ref, b_ref, *o_refs, eps, splits):
    x = x_ref[0].astype(jnp.float32)                     # (C, T)
    mean = jnp.mean(x, axis=0, keepdims=True)            # (1, T)
    xc = x - mean
    var = jnp.mean(xc * xc, axis=0, keepdims=True)       # biased variance
    y = xc * lax.rsqrt(var + eps)
    y = y * lw_ref[...].astype(jnp.float32) + lb_ref[...].astype(jnp.float32)
    w = w_ref[...].astype(jnp.float32)                   # (Cout_total, C)
    b = b_ref[...].astype(jnp.float32)                   # (Cout_total, 1)
    off = 0
    for o_ref, co in zip(o_refs, splits):
        z = _mac(w[off:off + co, :], y) + b[off:off + co, :]
        o_ref[0] = z.astype(o_ref.dtype)
        off += co


def layernorm_pointwise_split(x, ln_w, ln_b, eps, conv_w, conv_b, splits):
    """LayerNorm(channels_first) fused with a 1x1 conv; returns one output per
    channel chunk in `splits` (sum(splits) == conv_w.shape[0])."""
    N, C, H, W = x.shape
    HW = H * W
    cout = int(conv_w.shape[0])
    assert sum(splits) == cout
    x3 = x.reshape(N, C, HW)
    lw = ln_w.reshape(C, 1).astype(jnp.float32)
    lb = ln_b.reshape(C, 1).astype(jnp.float32)
    w2 = conv_w.reshape(cout, C).astype(jnp.float32)
    b2 = conv_b.reshape(cout, 1).astype(jnp.float32)
    tile = _pick_hw_tile(HW, N, (C + cout) * 4)

    out_shapes = tuple(jax.ShapeDtypeStruct((N, co, HW), x.dtype) for co in splits)
    out_specs = [pl.BlockSpec((1, co, tile), lambda n, j: (n, 0, j)) for co in splits]

    outs = pl.pallas_call(
        functools.partial(_ln_pw_kernel, eps=eps, splits=tuple(splits)),
        out_shape=out_shapes,
        grid_spec=pltpu.PrefetchScalarGridSpec(
            num_scalar_prefetch=0,
            grid=(N, HW // tile),
            in_specs=[
                pl.BlockSpec((1, C, tile), lambda n, j: (n, 0, j)),
                pl.BlockSpec((C, 1), lambda n, j: (0, 0)),
                pl.BlockSpec((C, 1), lambda n, j: (0, 0)),
                pl.BlockSpec((cout, C), lambda n, j: (0, 0)),
                pl.BlockSpec((cout, 1), lambda n, j: (0, 0)),
            ],
            out_specs=out_specs,
        ),
        compiler_params=pltpu.CompilerParams(
            dimension_semantics=("parallel", "parallel")),
    )(x3, lw, lb, w2, b2)
    return tuple(o.reshape(N, co, H, W) for o, co in zip(outs, splits))


# ---------------------------------------------------------------------------
# Kernel 2: depthwise conv (one image-channel plane per grid step).
# Zero-padding happens inside VMEM; weights are scalar SMEM reads.
# ---------------------------------------------------------------------------
def _dw_kernel(x_ref, w_ref, b_ref, o_ref, pad_scr, *, k, dil, H, W):
    c = pl.program_id(1)
    P = (k // 2) * dil
    Hp, Wp = H + 2 * P, W + 2 * P
    pad_scr[...] = jnp.zeros((Hp, Wp), jnp.float32)
    pad_scr[pl.ds(P, H), pl.ds(P, W)] = x_ref[0, 0].astype(jnp.float32)
    acc = jnp.zeros((H, W), jnp.float32)
    for ki in range(k):
        for kj in range(k):
            tap = w_ref[c, ki * k + kj]
            acc = acc + tap * pad_scr[pl.ds(ki * dil, H), pl.ds(kj * dil, W)]
    o_ref[0, 0] = (acc + b_ref[c]).astype(o_ref.dtype)


def depthwise_conv_xla(x, w, b, *, dilation=1):
    """XLA fallback / pure-JAX reference for depthwise conv."""
    C = x.shape[1]
    k = w.shape[2]
    pad = (k // 2) * dilation
    y = lax.conv_general_dilated(
        x, w, window_strides=(1, 1),
        padding=((pad, pad), (pad, pad)),
        rhs_dilation=(dilation, dilation),
        dimension_numbers=("NCHW", "OIHW", "NCHW"),
        feature_group_count=C,
        precision=lax.Precision.HIGHEST)
    return y + b[None, :, None, None]


def depthwise_conv(x, w, b, *, dilation=1):
    """Depthwise conv (groups == channels), PyTorch-style 'same' padding."""
    N, C, H, W = x.shape
    k = int(w.shape[2])
    P = (k // 2) * dilation
    Hp, Wp = H + 2 * P, W + 2 * P
    if (Hp * Wp + 6 * H * W) * 4 > _vmem_budget_bytes():
        # TODO(synk): spatially tile very large images (halo exchange).
        return depthwise_conv_xla(x, w, b, dilation=dilation)
    return pl.pallas_call(
        functools.partial(_dw_kernel, k=k, dil=dilation, H=H, W=W),
        out_shape=jax.ShapeDtypeStruct((N, C, H, W), x.dtype),
        grid_spec=pltpu.PrefetchScalarGridSpec(
            num_scalar_prefetch=0,
            grid=(N, C),
            in_specs=[
                pl.BlockSpec((1, 1, H, W), lambda n, c: (n, c, 0, 0)),
                pl.BlockSpec(memory_space=pltpu.MemorySpace.SMEM),   # weights
                pl.BlockSpec(memory_space=pltpu.MemorySpace.SMEM),   # bias
            ],
            out_specs=pl.BlockSpec((1, 1, H, W), lambda n, c: (n, c, 0, 0)),
            scratch_shapes=[pltpu.VMEM((Hp, Wp), jnp.float32)],
        ),
        compiler_params=pltpu.CompilerParams(
            dimension_semantics=("parallel", "parallel")),
    )(x, w.reshape(C, k * k).astype(jnp.float32), b.astype(jnp.float32))


# ---------------------------------------------------------------------------
# Kernel 3: fused MLKA branch - dw(k1) -> dilated dw(k2) chain and the
# parallel X_k dw conv, all from one in-VMEM zero-padded plane.
# ---------------------------------------------------------------------------
def _lka_branch_kernel(a_ref, w1_ref, b1_ref, w2_ref, b2_ref, wx_ref, bx_ref,
                       d_ref, xi_ref, pad_scr, t_scr, *, k1, k2, dil2, kx, H, W):
    c = pl.program_id(1)
    p1 = k1 // 2
    p2 = (k2 // 2) * dil2
    px = kx // 2
    P = p1 + p2
    Hp, Wp = H + 2 * P, W + 2 * P
    Ht, Wt = H + 2 * p2, W + 2 * p2

    pad_scr[...] = jnp.zeros((Hp, Wp), jnp.float32)
    pad_scr[pl.ds(P, H), pl.ds(P, W)] = a_ref[0, 0].astype(jnp.float32)

    # first depthwise conv (k1, dilation 1) on the valid image region
    t = jnp.zeros((H, W), jnp.float32)
    for ki in range(k1):
        for kj in range(k1):
            tap = w1_ref[c, ki * k1 + kj]
            t = t + tap * pad_scr[pl.ds(p2 + ki, H), pl.ds(p2 + kj, W)]
    # zero-pad conv1 output (+ its bias) by p2 for the dilated conv
    t_scr[...] = jnp.zeros((Ht, Wt), jnp.float32)
    t_scr[pl.ds(p2, H), pl.ds(p2, W)] = t + b1_ref[c]

    # second (dilated) depthwise conv -> d
    d = jnp.zeros((H, W), jnp.float32)
    for ki in range(k2):
        for kj in range(k2):
            tap = w2_ref[c, ki * k2 + kj]
            d = d + tap * t_scr[pl.ds(ki * dil2, H), pl.ds(kj * dil2, W)]
    d_ref[0, 0] = (d + b2_ref[c]).astype(d_ref.dtype)

    # parallel X_k depthwise conv (kx, dilation 1) from the same padded plane
    off = P - px
    xi = jnp.zeros((H, W), jnp.float32)
    for ki in range(kx):
        for kj in range(kx):
            tap = wx_ref[c, ki * kx + kj]
            xi = xi + tap * pad_scr[pl.ds(off + ki, H), pl.ds(off + kj, W)]
    xi_ref[0, 0] = (xi + bx_ref[c]).astype(xi_ref.dtype)


def lka_branch(a, lka_params, x_params):
    """Returns (d, xi) with d = dilated_dw(dw(a)) and xi = dwX(a); the branch
    1x1 conv and the products are fused into the MLKA epilogue kernel."""
    (w1, b1, _), (w2, b2, dil2), _pw = lka_params
    wx, bx = x_params
    N, g, H, W = a.shape
    k1, k2, kx = int(w1.shape[2]), int(w2.shape[2]), int(wx.shape[2])
    p2 = (k2 // 2) * dil2
    P = (k1 // 2) + p2
    Hp, Wp = H + 2 * P, W + 2 * P
    Ht, Wt = H + 2 * p2, W + 2 * p2
    if (Hp * Wp + Ht * Wt + 6 * H * W) * 4 > _vmem_budget_bytes():
        # TODO(synk): spatially tile very large images (halo exchange).
        d = depthwise_conv_xla(depthwise_conv_xla(a, w1, b1), w2, b2, dilation=dil2)
        xi = depthwise_conv_xla(a, wx, bx)
        return d, xi

    d, xi = pl.pallas_call(
        functools.partial(_lka_branch_kernel,
                          k1=k1, k2=k2, dil2=dil2, kx=kx, H=H, W=W),
        out_shape=(jax.ShapeDtypeStruct((N, g, H, W), a.dtype),
                   jax.ShapeDtypeStruct((N, g, H, W), a.dtype)),
        grid_spec=pltpu.PrefetchScalarGridSpec(
            num_scalar_prefetch=0,
            grid=(N, g),
            in_specs=[
                pl.BlockSpec((1, 1, H, W), lambda n, c: (n, c, 0, 0)),
                pl.BlockSpec(memory_space=pltpu.MemorySpace.SMEM),   # w1
                pl.BlockSpec(memory_space=pltpu.MemorySpace.SMEM),   # b1
                pl.BlockSpec(memory_space=pltpu.MemorySpace.SMEM),   # w2
                pl.BlockSpec(memory_space=pltpu.MemorySpace.SMEM),   # b2
                pl.BlockSpec(memory_space=pltpu.MemorySpace.SMEM),   # wx
                pl.BlockSpec(memory_space=pltpu.MemorySpace.SMEM),   # bx
            ],
            out_specs=[
                pl.BlockSpec((1, 1, H, W), lambda n, c: (n, c, 0, 0)),
                pl.BlockSpec((1, 1, H, W), lambda n, c: (n, c, 0, 0)),
            ],
            scratch_shapes=[pltpu.VMEM((Hp, Wp), jnp.float32),
                            pltpu.VMEM((Ht, Wt), jnp.float32)],
        ),
        compiler_params=pltpu.CompilerParams(
            dimension_semantics=("parallel", "parallel")),
    )(a,
      w1.reshape(g, k1 * k1).astype(jnp.float32), b1.astype(jnp.float32),
      w2.reshape(g, k2 * k2).astype(jnp.float32), b2.astype(jnp.float32),
      wx.reshape(g, kx * kx).astype(jnp.float32), bx.astype(jnp.float32))
    return d, xi


# ---------------------------------------------------------------------------
# Kernel 4: MLKA epilogue - per-branch 1x1, *X_k, *h, proj_last, *scale, +res.
# ---------------------------------------------------------------------------
def _mlka_tail_kernel(h_ref, d1_ref, d2_ref, d3_ref, x1_ref, x2_ref, x3_ref,
                      sc_ref, lw_ref, lb_ref, pw_ref, pb_ref, s_ref, o_ref, *, g):
    h = h_ref[0].astype(jnp.float32)                      # (C, T)
    acc = pb_ref[...].astype(jnp.float32)                 # (C, 1) -> broadcasts
    branches = ((d1_ref, x1_ref), (d2_ref, x2_ref), (d3_ref, x3_ref))
    for i, (dref, xref) in enumerate(branches):
        d = dref[0].astype(jnp.float32)                   # (g, T)
        xi = xref[0].astype(jnp.float32)                  # (g, T)
        lka = _mac(lw_ref[i].astype(jnp.float32), d) + lb_ref[i].astype(jnp.float32)
        m = h[i * g:(i + 1) * g, :] * (lka * xi)          # (g, T)
        acc = acc + _mac(pw_ref[i].astype(jnp.float32), m)  # (C, T)
    o_ref[0] = (acc * s_ref[...].astype(jnp.float32)
                + sc_ref[0].astype(jnp.float32)).astype(o_ref.dtype)


def mlka_tail(h, ds, xis, shortcut, lka_w, lka_b, proj_w, proj_b, scale):
    N, C, H, W = h.shape
    g = ds[0].shape[1]
    HW = H * W
    pw2 = proj_w.reshape(C, C).astype(jnp.float32)
    pw_split = jnp.stack([pw2[:, i * g:(i + 1) * g] for i in range(3)])  # (3,C,g)
    pb = proj_b.reshape(C, 1).astype(jnp.float32)
    s2 = scale.reshape(C, 1).astype(jnp.float32)
    tile = _pick_hw_tile(HW, N, 5 * C * 4)

    def cspec():
        return pl.BlockSpec((1, C, tile), lambda n, j: (n, 0, j))

    def gspec():
        return pl.BlockSpec((1, g, tile), lambda n, j: (n, 0, j))

    out = pl.pallas_call(
        functools.partial(_mlka_tail_kernel, g=g),
        out_shape=jax.ShapeDtypeStruct((N, C, HW), h.dtype),
        grid_spec=pltpu.PrefetchScalarGridSpec(
            num_scalar_prefetch=0,
            grid=(N, HW // tile),
            in_specs=[
                cspec(),                                  # h
                gspec(), gspec(), gspec(),                # d1, d2, d3
                gspec(), gspec(), gspec(),                # x1, x2, x3
                cspec(),                                  # shortcut
                pl.BlockSpec((3, g, g), lambda n, j: (0, 0, 0)),   # lka 1x1 w
                pl.BlockSpec((3, g, 1), lambda n, j: (0, 0, 0)),   # lka 1x1 b
                pl.BlockSpec((3, C, g), lambda n, j: (0, 0, 0)),   # proj_last w
                pl.BlockSpec((C, 1), lambda n, j: (0, 0)),         # proj_last b
                pl.BlockSpec((C, 1), lambda n, j: (0, 0)),         # scale
            ],
            out_specs=pl.BlockSpec((1, C, tile), lambda n, j: (n, 0, j)),
        ),
        compiler_params=pltpu.CompilerParams(
            dimension_semantics=("parallel", "parallel")),
    )(h.reshape(N, C, HW),
      ds[0].reshape(N, g, HW), ds[1].reshape(N, g, HW), ds[2].reshape(N, g, HW),
      xis[0].reshape(N, g, HW), xis[1].reshape(N, g, HW), xis[2].reshape(N, g, HW),
      shortcut.reshape(N, C, HW),
      lka_w, lka_b, pw_split, pb, s2)
    return out.reshape(N, C, H, W)


# ---------------------------------------------------------------------------
# Kernel 5: GSAU epilogue - (h * dwconv) -> Conv2 -> *scale + shortcut.
# ---------------------------------------------------------------------------
def _gsau_tail_kernel(h_ref, a_ref, sc_ref, w_ref, b_ref, s_ref, o_ref):
    h = h_ref[0].astype(jnp.float32)
    a = a_ref[0].astype(jnp.float32)
    m = h * a
    y = _mac(w_ref[...].astype(jnp.float32), m) + b_ref[...].astype(jnp.float32)
    o_ref[0] = (y * s_ref[...].astype(jnp.float32)
                + sc_ref[0].astype(jnp.float32)).astype(o_ref.dtype)


def gsau_tail(h, dwa, shortcut, conv2_w, conv2_b, scale):
    N, C, H, W = h.shape
    HW = H * W
    w2 = conv2_w.reshape(C, C).astype(jnp.float32)
    b2 = conv2_b.reshape(C, 1).astype(jnp.float32)
    s2 = scale.reshape(C, 1).astype(jnp.float32)
    tile = _pick_hw_tile(HW, N, 4 * C * 4)
    out = pl.pallas_call(
        _gsau_tail_kernel,
        out_shape=jax.ShapeDtypeStruct((N, C, HW), h.dtype),
        grid_spec=pltpu.PrefetchScalarGridSpec(
            num_scalar_prefetch=0,
            grid=(N, HW // tile),
            in_specs=[
                pl.BlockSpec((1, C, tile), lambda n, j: (n, 0, j)),  # h
                pl.BlockSpec((1, C, tile), lambda n, j: (n, 0, j)),  # dwconv(a)
                pl.BlockSpec((1, C, tile), lambda n, j: (n, 0, j)),  # shortcut
                pl.BlockSpec((C, C), lambda n, j: (0, 0)),
                pl.BlockSpec((C, 1), lambda n, j: (0, 0)),
                pl.BlockSpec((C, 1), lambda n, j: (0, 0)),
            ],
            out_specs=pl.BlockSpec((1, C, tile), lambda n, j: (n, 0, j)),
        ),
        compiler_params=pltpu.CompilerParams(
            dimension_semantics=("parallel", "parallel")),
    )(h.reshape(N, C, HW), dwa.reshape(N, C, HW), shortcut.reshape(N, C, HW),
      w2, b2, s2)
    return out.reshape(N, C, H, W)


# ---------------------------------------------------------------------------
# Standalone LayerNorm kernels (API parity with the PyTorch LayerNorm module;
# inside MAB the channels_first LN always runs fused with the 1x1 conv).
# ---------------------------------------------------------------------------
def _ln_cf_kernel(x_ref, w_ref, b_ref, o_ref, *, eps):
    x = x_ref[0].astype(jnp.float32)
    mean = jnp.mean(x, axis=0, keepdims=True)
    xc = x - mean
    var = jnp.mean(xc * xc, axis=0, keepdims=True)
    y = xc * lax.rsqrt(var + eps)
    y = y * w_ref[...].astype(jnp.float32) + b_ref[...].astype(jnp.float32)
    o_ref[0] = y.astype(o_ref.dtype)


def layernorm_channels_first(x, weight, bias, eps):
    N, C, H, W = x.shape
    HW = H * W
    tile = _pick_hw_tile(HW, N, 2 * C * 4)
    out = pl.pallas_call(
        functools.partial(_ln_cf_kernel, eps=eps),
        out_shape=jax.ShapeDtypeStruct((N, C, HW), x.dtype),
        grid_spec=pltpu.PrefetchScalarGridSpec(
            num_scalar_prefetch=0,
            grid=(N, HW // tile),
            in_specs=[
                pl.BlockSpec((1, C, tile), lambda n, j: (n, 0, j)),
                pl.BlockSpec((C, 1), lambda n, j: (0, 0)),
                pl.BlockSpec((C, 1), lambda n, j: (0, 0)),
            ],
            out_specs=pl.BlockSpec((1, C, tile), lambda n, j: (n, 0, j)),
        ),
        compiler_params=pltpu.CompilerParams(
            dimension_semantics=("parallel", "parallel")),
    )(x.reshape(N, C, HW), weight.reshape(C, 1), bias.reshape(C, 1))
    return out.reshape(N, C, H, W)


def _ln_rows_kernel(x_ref, w_ref, b_ref, o_ref, *, eps):
    x = x_ref[...].astype(jnp.float32)
    mean = jnp.mean(x, axis=-1, keepdims=True)
    xc = x - mean
    var = jnp.mean(xc * xc, axis=-1, keepdims=True)
    y = xc * lax.rsqrt(var + eps)
    y = y * w_ref[...].astype(jnp.float32) + b_ref[...].astype(jnp.float32)
    o_ref[...] = y.astype(o_ref.dtype)


def layernorm_channels_last(x, weight, bias, eps):
    C = x.shape[-1]
    lead = x.shape[:-1]
    rows = math.prod(lead) if lead else 1
    x2 = x.reshape(rows, C)
    tile_rows = rows
    if rows % 8 == 0:
        for cand in (2048, 1024, 512, 256, 128, 64, 32, 16, 8):
            if rows % cand == 0 and cand * C * 4 * 4 <= _vmem_budget_bytes() // 3:
                tile_rows = cand
                break
    out = pl.pallas_call(
        functools.partial(_ln_rows_kernel, eps=eps),
        out_shape=jax.ShapeDtypeStruct((rows, C), x.dtype),
        grid_spec=pltpu.PrefetchScalarGridSpec(
            num_scalar_prefetch=0,
            grid=(rows // tile_rows,),
            in_specs=[
                pl.BlockSpec((tile_rows, C), lambda i: (i, 0)),
                pl.BlockSpec((1, C), lambda i: (0, 0)),
                pl.BlockSpec((1, C), lambda i: (0, 0)),
            ],
            out_specs=pl.BlockSpec((tile_rows, C), lambda i: (i, 0)),
        ),
        compiler_params=pltpu.CompilerParams(
            dimension_semantics=("parallel",)),
    )(x2, weight.reshape(1, C), bias.reshape(1, C))
    return out.reshape(x.shape)


# ---------------------------------------------------------------------------
# Parameter helpers
# ---------------------------------------------------------------------------
class _KeyGen:
    def __init__(self, key):
        self._key = key

    def __call__(self):
        self._key, sub = jax.random.split(self._key)
        return sub


def _param(kg, shape, scale=0.1, offset=0.0):
    return offset + scale * jax.random.normal(kg(), shape, dtype=jnp.float32)


# ---------------------------------------------------------------------------
# Modules (JAX/Pallas ports of the PyTorch modules)
# ---------------------------------------------------------------------------
class LayerNorm:
    def __init__(self, normalized_shape, eps=1e-6, data_format="channels_last"):
        if data_format not in ("channels_last", "channels_first"):
            raise NotImplementedError
        self.weight = jnp.ones((normalized_shape,), jnp.float32)
        self.bias = jnp.zeros((normalized_shape,), jnp.float32)
        self.eps = eps
        self.data_format = data_format
        self.normalized_shape = (normalized_shape,)

    def __call__(self, x):
        if self.data_format == "channels_last":
            return layernorm_channels_last(x, self.weight, self.bias, self.eps)
        return layernorm_channels_first(x, self.weight, self.bias, self.eps)


class GSAU:
    def __init__(self, n_feats, key):
        i_feats = n_feats * 2
        kg = _KeyGen(key)
        self.n_feats = n_feats
        self.norm = LayerNorm(n_feats, data_format="channels_first")
        self.norm.weight = _param(kg, (n_feats,), 0.1, 1.0)
        self.norm.bias = _param(kg, (n_feats,), 0.1)
        self.conv1_w = _param(kg, (i_feats, n_feats, 1, 1))
        self.conv1_b = _param(kg, (i_feats,))
        self.dwconv1_w = _param(kg, (n_feats, 1, 7, 7))
        self.dwconv1_b = _param(kg, (n_feats,))
        self.conv2_w = _param(kg, (n_feats, n_feats, 1, 1))
        self.conv2_b = _param(kg, (n_feats,))
        # PyTorch zero-inits scale; non-zero here so the test exercises the
        # full datapath (it is a learnable parameter).
        self.scale = _param(kg, (1, n_feats, 1, 1), 0.1)

    def __call__(self, x):
        shortcut = x
        a, h = layernorm_pointwise_split(                  # fused LN + Conv1
            x, self.norm.weight, self.norm.bias, self.norm.eps,
            self.conv1_w, self.conv1_b, splits=(self.n_feats, self.n_feats))
        dwa = depthwise_conv(a, self.dwconv1_w, self.dwconv1_b)  # Pallas dw
        return gsau_tail(h, dwa, shortcut,                 # fused epilogue
                         self.conv2_w, self.conv2_b, self.scale)


class MLKA:
    def __init__(self, n_feats, key):
        if n_feats % 3 != 0:
            raise ValueError("n_feats must be divisible by 3 for MLKA")
        i_feats = 2 * n_feats
        g = n_feats // 3
        self.n_feats, self.g = n_feats, g
        kg = _KeyGen(key)

        self.norm = LayerNorm(n_feats, data_format="channels_first")
        self.norm.weight = _param(kg, (n_feats,), 0.1, 1.0)
        self.norm.bias = _param(kg, (n_feats,), 0.1)
        self.scale = _param(kg, (1, n_feats, 1, 1), 0.1)   # non-zero for testing

        def dwp(c, k, d):
            return (_param(kg, (c, 1, k, k)), _param(kg, (c,)), d)

        def pw(co, ci):
            return (_param(kg, (co, ci, 1, 1)), _param(kg, (co,)))

        self.lka7 = (dwp(g, 7, 1), dwp(g, 9, 4), pw(g, g))
        self.lka5 = (dwp(g, 5, 1), dwp(g, 7, 3), pw(g, g))
        self.lka3 = (dwp(g, 3, 1), dwp(g, 5, 2), pw(g, g))
        self.x3 = (_param(kg, (g, 1, 3, 3)), _param(kg, (g,)))
        self.x5 = (_param(kg, (g, 1, 5, 5)), _param(kg, (g,)))
        self.x7 = (_param(kg, (g, 1, 7, 7)), _param(kg, (g,)))
        self.proj_first_w, self.proj_first_b = pw(i_feats, n_feats)
        self.proj_last_w, self.proj_last_b = pw(n_feats, n_feats)

    def __call__(self, x):
        shortcut = x
        g, n = self.g, self.n_feats
        a1, a2, a3, h = layernorm_pointwise_split(         # fused LN + proj_first
            x, self.norm.weight, self.norm.bias, self.norm.eps,
            self.proj_first_w, self.proj_first_b, splits=(g, g, g, n))
        d1, xi1 = lka_branch(a1, self.lka3, self.x3)       # fused dw chains
        d2, xi2 = lka_branch(a2, self.lka5, self.x5)
        d3, xi3 = lka_branch(a3, self.lka7, self.x7)
        lka_w = jnp.stack([self.lka3[2][0].reshape(g, g),
                           self.lka5[2][0].reshape(g, g),
                           self.lka7[2][0].reshape(g, g)])
        lka_b = jnp.stack([self.lka3[2][1].reshape(g, 1),
                           self.lka5[2][1].reshape(g, 1),
                           self.lka7[2][1].reshape(g, 1)])
        return mlka_tail(h, (d1, d2, d3), (xi1, xi2, xi3), shortcut,
                         lka_w, lka_b, self.proj_last_w, self.proj_last_b,
                         self.scale)                        # fused epilogue


class MAB:
    def __init__(self, n_feats, key):
        k1, k2 = jax.random.split(key)
        self.LKA = MLKA(n_feats, k1)
        self.LFE = GSAU(n_feats, k2)

    def __call__(self, x):
        return self.LFE(self.LKA(x))


# ---------------------------------------------------------------------------
# Pure-JAX (XLA-only) reference for correctness checking
# ---------------------------------------------------------------------------
def _ref_ln_cf(x, weight, bias, eps):
    u = x.mean(axis=1, keepdims=True)
    s = ((x - u) ** 2).mean(axis=1, keepdims=True)
    xn = (x - u) / jnp.sqrt(s + eps)
    return weight[None, :, None, None] * xn + bias[None, :, None, None]


def _ref_conv1x1(x, w, b):
    y = lax.conv_general_dilated(
        x, w, (1, 1), ((0, 0), (0, 0)),
        dimension_numbers=("NCHW", "OIHW", "NCHW"),
        precision=lax.Precision.HIGHEST)
    return y + b[None, :, None, None]


def _ref_lka(x, p):
    (w1, b1, d1), (w2, b2, d2), (wp, bp) = p
    h = depthwise_conv_xla(x, w1, b1, dilation=d1)
    h = depthwise_conv_xla(h, w2, b2, dilation=d2)
    return _ref_conv1x1(h, wp, bp)


def _ref_mlka(m, x):
    shortcut = x
    h = _ref_ln_cf(x, m.norm.weight, m.norm.bias, m.norm.eps)
    h = _ref_conv1x1(h, m.proj_first_w, m.proj_first_b)
    a, h = jnp.split(h, 2, axis=1)
    a1, a2, a3 = jnp.split(a, 3, axis=1)
    a = jnp.concatenate([
        _ref_lka(a1, m.lka3) * depthwise_conv_xla(a1, *m.x3),
        _ref_lka(a2, m.lka5) * depthwise_conv_xla(a2, *m.x5),
        _ref_lka(a3, m.lka7) * depthwise_conv_xla(a3, *m.x7),
    ], axis=1)
    return _ref_conv1x1(h * a, m.proj_last_w, m.proj_last_b) * m.scale + shortcut


def _ref_gsau(m, x):
    shortcut = x
    h = _ref_ln_cf(x, m.norm.weight, m.norm.bias, m.norm.eps)
    h = _ref_conv1x1(h, m.conv1_w, m.conv1_b)
    a, h = jnp.split(h, 2, axis=1)
    h = h * depthwise_conv_xla(a, m.dwconv1_w, m.dwconv1_b)
    h = _ref_conv1x1(h, m.conv2_w, m.conv2_b)
    return h * m.scale + shortcut


def _ref_mab(m, x):
    return _ref_gsau(m.LFE, _ref_mlka(m.LKA, x))


# ---------------------------------------------------------------------------
if __name__ == "__main__":
    key = jax.random.PRNGKey(0)
    k_x, k_mod, k_cl = jax.random.split(key, 3)

    n_feats, N, H, W = 6, 2, 16, 16
    x = jax.random.normal(k_x, (N, n_feats, H, W), dtype=jnp.float32)

    mab = MAB(n_feats, k_mod)

    # 1) standalone channels_first LayerNorm kernel (API parity path).
    ln = mab.LKA.norm
    y_ln = jax.block_until_ready(
        layernorm_channels_first(x, ln.weight, ln.bias, ln.eps))
    ref_ln = _ref_ln_cf(x, ln.weight, ln.bias, ln.eps)
    assert jnp.allclose(y_ln, ref_ln, atol=1e-5, rtol=1e-5), \
        "LayerNorm(channels_first) mismatch"

    # 2) full MAB forward: fused LN+1x1, Pallas depthwise chains, fused
    #    epilogues -- everything on-chip except the module-boundary tensors.
    y = jax.block_until_ready(jax.jit(mab.__call__)(x))
    y_ref = _ref_mab(mab, x)
    assert y.shape == x.shape
    assert jnp.allclose(y, y_ref, atol=1e-4, rtol=1e-4), "MAB forward mismatch"

    # 3) channels_last LayerNorm path (API parity; not used inside MAB).
    x_cl = jax.random.normal(k_cl, (2, 8, 8, 32), dtype=jnp.float32)
    ln_cl = LayerNorm(32, data_format="channels_last")
    y_cl = jax.block_until_ready(ln_cl(x_cl))
    u = x_cl.mean(-1, keepdims=True)
    s = ((x_cl - u) ** 2).mean(-1, keepdims=True)
    ref_cl = (x_cl - u) / jnp.sqrt(s + ln_cl.eps) * ln_cl.weight + ln_cl.bias
    assert jnp.allclose(y_cl, ref_cl, atol=1e-5, rtol=1e-5), \
        "LayerNorm(channels_last) mismatch"

    print("KERNEL_OK")
</pallas_src>

<mosaic_0001>
module attributes {stable_mosaic.version = 11 : i64} {
  func.func @_ln_cf_kernel(%arg0: i32, %arg1: i32, %arg2: memref<1x6x256xf32, #tpu.memory_space<vmem>>, %arg3: memref<6x1xf32, #tpu.memory_space<vmem>>, %arg4: memref<6x1xf32, #tpu.memory_space<vmem>>, %arg5: memref<1x6x256xf32, #tpu.memory_space<vmem>>) attributes {dimension_semantics = [#tpu.dimension_semantics<parallel>, #tpu.dimension_semantics<parallel>], iteration_bounds = array<i64: 2, 1>, scalar_prefetch = 0 : i64, scratch_operands = 0 : i64, tpu.core_type = #tpu.core_type<tc>, window_params = [{transform_indices = @transform_0, window_bounds = array<i64: 1, 6, 256>}, {pipeline_mode = #tpu.pipeline_mode<synchronous>, transform_indices = @transform_1, window_bounds = array<i64: 6, 1>}, {pipeline_mode = #tpu.pipeline_mode<synchronous>, transform_indices = @transform_2, window_bounds = array<i64: 6, 1>}, {transform_indices = @transform_3, window_bounds = array<i64: 1, 6, 256>}]} {
    %c0 = arith.constant 0 : index
    %c0_0 = arith.constant 0 : index
    %c0_1 = arith.constant 0 : index
    %0 = vector.load %arg2[%c0, %c0_0, %c0_1] : memref<1x6x256xf32, #tpu.memory_space<vmem>>, vector<1x6x256xf32>
    %1 = vector.shape_cast %0 : vector<1x6x256xf32> to vector<6x256xf32>
    %cst = arith.constant dense<0.000000e+00> : vector<256xf32>
    %2 = vector.multi_reduction <add>, %1, %cst [0] : vector<6x256xf32> to vector<256xf32>
    %3 = vector.shape_cast %2 : vector<256xf32> to vector<1x256xf32>
    %cst_2 = arith.constant 6.000000e+00 : f32
    %4 = vector.broadcast %cst_2 : f32 to vector<1x256xf32>
    %5 = arith.divf %3, %4 : vector<1x256xf32>
    %6 = vector.broadcast %5 : vector<1x256xf32> to vector<6x256xf32>
    %7 = arith.subf %1, %6 : vector<6x256xf32>
    %8 = arith.mulf %7, %7 : vector<6x256xf32>
    %cst_3 = arith.constant dense<0.000000e+00> : vector<256xf32>
    %9 = vector.multi_reduction <add>, %8, %cst_3 [0] : vector<6x256xf32> to vector<256xf32>
    %10 = vector.shape_cast %9 : vector<256xf32> to vector<1x256xf32>
    %cst_4 = arith.constant 6.000000e+00 : f32
    %11 = vector.broadcast %cst_4 : f32 to vector<1x256xf32>
    %12 = arith.divf %10, %11 : vector<1x256xf32>
    %cst_5 = arith.constant 9.99999997E-7 : f32
    %13 = vector.broadcast %cst_5 : f32 to vector<1x256xf32>
    %14 = arith.addf %12, %13 : vector<1x256xf32>
    %15 = math.rsqrt %14 : vector<1x256xf32>
    %16 = vector.broadcast %15 : vector<1x256xf32> to vector<6x256xf32>
    %17 = arith.mulf %7, %16 : vector<6x256xf32>
    %c0_6 = arith.constant 0 : index
    %c0_7 = arith.constant 0 : index
    %18 = vector.load %arg3[%c0_6, %c0_7] : memref<6x1xf32, #tpu.memory_space<vmem>>, vector<6x1xf32>
    %19 = vector.broadcast %18 : vector<6x1xf32> to vector<6x256xf32>
    %20 = arith.mulf %17, %19 : vector<6x256xf32>
    %c0_8 = arith.constant 0 : index
    %c0_9 = arith.constant 0 : index
    %21 = vector.load %arg4[%c0_8, %c0_9] : memref<6x1xf32, #tpu.memory_space<vmem>>, vector<6x1xf32>
    %22 = vector.broadcast %21 : vector<6x1xf32> to vector<6x256xf32>
    %23 = arith.addf %20, %22 : vector<6x256xf32>
    %c0_10 = arith.constant 0 : index
    %c0_11 = arith.constant 0 : index
    %c0_12 = arith.constant 0 : index
    %24 = vector.load %arg5[%c0_10, %c0_11, %c0_12] : memref<1x6x256xf32, #tpu.memory_space<vmem>>, vector<1x6x256xf32>
    %25 = vector.shape_cast %24 : vector<1x6x256xf32> to vector<6x256xf32>
    %26 = vector.shape_cast %23 : vector<6x256xf32> to vector<1x6x256xf32>
    tpu.vector_store %arg5[%c0_10, %c0_11, %c0_12], %26 {strides = array<i32>} : memref<1x6x256xf32, #tpu.memory_space<vmem>>, vector<1x6x256xf32>,
    return
  }
  func.func @transform_0(%arg0: i32, %arg1: i32) -> (i32, i32, i32) {
    %c0_i32 = arith.constant 0 : i32
    %c0_i32_0 = arith.constant 0 : i32
    return %arg0, %c0_i32, %arg1 : i32, i32, i32
  }
  func.func @transform_1(%arg0: i32, %arg1: i32) -> (i32, i32) {
    %c0_i32 = arith.constant 0 : i32
    %c0_i32_0 = arith.constant 0 : i32
    %c0_i32_1 = arith.constant 0 : i32
    return %c0_i32, %c0_i32_0 : i32, i32
  }
  func.func @transform_2(%arg0: i32, %arg1: i32) -> (i32, i32) {
    %c0_i32 = arith.constant 0 : i32
    %c0_i32_0 = arith.constant 0 : i32
    %c0_i32_1 = arith.constant 0 : i32
    return %c0_i32, %c0_i32_0 : i32, i32
  }
  func.func @transform_3(%arg0: i32, %arg1: i32) -> (i32, i32, i32) {
    %c0_i32 = arith.constant 0 : i32
    %c0_i32_0 = arith.constant 0 : i32
    return %arg0, %c0_i32, %arg1 : i32, i32, i32
  }
}

</mosaic_0001>

<llo_original>
// kernel: tpu_custom_call.1
$region0: #{tpu_custom_call.1}
  #allocation0 [shape = 'u32[]', space=smem, size = 0x4, offset = 0x4, fixed_abs, tag = 'smem constant byte address 0x4 - core index']
  #allocation1 [shape = 'u32[144,128]{1,0:T(1,128)}', space=vmem, size = 0x12000, scoped, tag = 'internal scratch']
  %s0 = inlined_call_operand.vmem [shape: f32[2,6,256], index: 0, kind: input, shape index: {}]
  %s1 = inlined_call_operand.vmem [shape: f32[6,1], index: 1, kind: input, shape index: {}]
  %s2 = inlined_call_operand.vmem [shape: f32[6,1], index: 2, kind: input, shape index: {}]
  %s3 = inlined_call_operand.vmem [shape: f32[2,6,256], index: 3, kind: output, shape index: {}]
  %s4 = sld [smem:[#allocation0]]
  $region45: #{tpu_custom_call.1} parent=0
    _
  %s6 = ssub.s32 1, %s4
  %s7 = scalar_select 0, %s6, %s4
  loop: start=0, step=1, limit=4
  $region2: #{tpu_custom_call.1} parent=0 // loop_pre_header
    _
  $region3: #{tpu_custom_call.1} parent=0 // loop_header
    %s9 = sphi 0, %s13
    %p10 = scmp.ge.s32.totalorder %s9, 4
    %s16 = sphi 0, %s28
    %s17 = sphi 0, %s24
    %s18 = sphi 0, %s16
    %s19 = sphi 0, %s17
    %s20 = sphi 0, %s18
    %s21 = sphi 0, %s19
    %s33 = sphi 0, %s35
    %s36 = sphi 0, %s33
    %s37 = sphi 0, %s36
    %s53 = sphi 0, %s37
    %s57 = sphi 0, %s57
    %s59 = sphi 0, %s57
    %s60 = sphi 0, %s59
    %s74 = sphi 0, %s60
    %s78 = sphi 0, %s78
    %s80 = sphi 0, %s78
    %s81 = sphi 0, %s80
    %s95 = sphi 0, %s81
    %s103 = sphi 0, %s105
    %s106 = sphi 0, %s103
    %s107 = sphi 0, %s106
    %s123 = sphi 0, %s107
  $region4: #{tpu_custom_call.1} parent=0 // loop_header_branch
    %12 = sbr.rel (%p10) target = $region8
  $region5: #{tpu_custom_call.1} parent=0 // loop_body
    %s14 = ssub.s32 %s9, 1
    %s15 = ssub.s32 %s9, 2
    %s22 = sadd.s32 1, %s17
    %p23 = scmp.ge.s32.totalorder %s22, 1
    %s24 = scalar_select %p23, 0, %s22
    %s25 = sadd.s32 1, %s16
    %s26 = scalar_select %p23, %s25, %s16
    %p27 = scmp.ge.s32.totalorder %s26, 2
    %s28 = scalar_select %p27, 0, %s26
    %s29 = ssub.s32 %s16, %s28
    %s30 = ssub.s32 %s17, %s24
    %s31 = sor.u32 %s29, %s30
    %p32 = scmp.eq.s32.totalorder %s31, 0
    %s34 = sadd.s32 %s33, 1
    %s35 = scalar_select %p32, %s33, %s34
    %p38 = pneg %p32
    %p39 = scmp.eq.s32.totalorder %s9, 1
    %p40 = por %p38, %p39
    %p41 = scmp.ne.s32.totalorder %s33, %s36
    %p42 = scmp.eq.s32.totalorder %s9, 0
    %p43 = por %p41, %p42
    %p44 = scmp.ne.s32.totalorder %s33, %s36
    %p45 = scmp.eq.s32.totalorder %s14, 1
    %p46 = por %p44, %p45
    %p47 = scmp.ne.s32.totalorder %s36, %s37
    %p48 = scmp.eq.s32.totalorder %s14, 0
    %p49 = por %p47, %p48
    %p50 = scmp.ne.s32.totalorder %s36, %s37
    %p51 = scmp.eq.s32.totalorder %s15, 1
    %p52 = por %p50, %p51
    %p54 = scmp.ne.s32.totalorder %s37, %s53
    %p55 = scmp.eq.s32.totalorder %s15, 0
    %p56 = por %p54, %p55
    %s58 = sadd.s32 %s57, 1
    %p61 = scmp.eq.s32.totalorder %s9, 1
    %p62 = scmp.ne.s32.totalorder %s57, %s59
    %p63 = scmp.eq.s32.totalorder %s9, 0
    %p64 = por %p62, %p63
    %p65 = scmp.ne.s32.totalorder %s57, %s59
    %p66 = scmp.eq.s32.totalorder %s14, 1
    %p67 = por %p65, %p66
    %p68 = scmp.ne.s32.totalorder %s59, %s60
    %p69 = scmp.eq.s32.totalorder %s14, 0
    %p70 = por %p68, %p69
    %p71 = scmp.ne.s32.totalorder %s59, %s60
    %p72 = scmp.eq.s32.totalorder %s15, 1
    %p73 = por %p71, %p72
    %p75 = scmp.ne.s32.totalorder %s60, %s74
    %p76 = scmp.eq.s32.totalorder %s15, 0
    %p77 = por %p75, %p76
    %s79 = sadd.s32 %s78, 1
    %p82 = scmp.eq.s32.totalorder %s9, 1
    %p83 = scmp.ne.s32.totalorder %s78, %s80
    %p84 = scmp.eq.s32.totalorder %s9, 0
    %p85 = por %p83, %p84
    %p86 = scmp.ne.s32.totalorder %s78, %s80
    %p87 = scmp.eq.s32.totalorder %s14, 1
    %p88 = por %p86, %p87
    %p89 = scmp.ne.s32.totalorder %s80, %s81
    %p90 = scmp.eq.s32.totalorder %s14, 0
    %p91 = por %p89, %p90
    %p92 = scmp.ne.s32.totalorder %s80, %s81
    %p93 = scmp.eq.s32.totalorder %s15, 1
    %p94 = por %p92, %p93
    %p96 = scmp.ne.s32.totalorder %s81, %s95
    %p97 = scmp.eq.s32.totalorder %s15, 0
    %p98 = por %p96, %p97
    %s99 = ssub.s32 %s16, %s28
    %s100 = ssub.s32 %s17, %s24
    %s101 = sor.u32 %s99, %s100
    %p102 = scmp.eq.s32.totalorder %s101, 0
    %s104 = sadd.s32 %s103, 1
    %s105 = scalar_select %p102, %s103, %s104
    %p108 = pneg %p102
    %p109 = scmp.eq.s32.totalorder %s9, 1
    %p110 = por %p108, %p109
    %p111 = scmp.ne.s32.totalorder %s103, %s106
    %p112 = scmp.eq.s32.totalorder %s9, 0
    %p113 = por %p111, %p112
    %p114 = scmp.ne.s32.totalorder %s103, %s106
    %p115 = scmp.eq.s32.totalorder %s14, 1
    %p116 = por %p114, %p115
    %p117 = scmp.ne.s32.totalorder %s106, %s107
    %p118 = scmp.eq.s32.totalorder %s14, 0
    %p119 = por %p117, %p118
    %p120 = scmp.ne.s32.totalorder %s106, %s107
    %p121 = scmp.eq.s32.totalorder %s15, 1
    %p122 = por %p120, %p121
    %p124 = scmp.ne.s32.totalorder %s107, %s123
    %p125 = scmp.eq.s32.totalorder %s15, 0
    %p126 = por %p124, %p125
    %p127 = scmp.le.s32.totalorder 1, %s9
    %p128 = scmp.lt.s32.totalorder %s9, 3
    %p129 = pnand %p127, %p128
    %p130 = pneg %p129
    // Predicated region
    $region9: #{tpu_custom_call.1} parent=5 // pred_check
      _
    $region10: #{tpu_custom_call.1} parent=5 // pred_check_branch
      %132 = sbr.rel (%p129) target = $region12
    $region11: #{tpu_custom_call.1} parent=5 // pred_region
      %s133 = ssub.s32 %s9, 1
      // Predicated region
      $region13: #{tpu_custom_call.1} parent=11 // pred_check
        %p134 = pneg %p70
      $region14: #{tpu_custom_call.1} parent=11 // pred_check_branch
        %136 = sbr.rel (%p134) target = $region16
      $region15: #{tpu_custom_call.1} parent=11 // pred_region
        _
      $region16: #{tpu_custom_call.1} parent=11 // pred_fallthru
        _
      // Predicated region
      $region17: #{tpu_custom_call.1} parent=11 // pred_check
        %p137 = pneg %p91
      $region18: #{tpu_custom_call.1} parent=11 // pred_check_branch
        %139 = sbr.rel (%p137) target = $region20
      $region19: #{tpu_custom_call.1} parent=11 // pred_region
        _
      $region20: #{tpu_custom_call.1} parent=11 // pred_fallthru
        _
    $region12: #{tpu_custom_call.1} parent=5 // pred_fallthru
      _
    %p140 = scmp.lt.s32.totalorder %s9, 2
    // Predicated region
    $region21: #{tpu_custom_call.1} parent=5 // pred_check
      %p141 = pneg %p140
    $region22: #{tpu_custom_call.1} parent=5 // pred_check_branch
      %143 = sbr.rel (%p141) target = $region24
    $region23: #{tpu_custom_call.1} parent=5 // pred_region
      // Predicated region
      $region25: #{tpu_custom_call.1} parent=23 // pred_check
        %p144 = pneg %p43
      $region26: #{tpu_custom_call.1} parent=23 // pred_check_branch
        %146 = sbr.rel (%p144) target = $region28
      $region27: #{tpu_custom_call.1} parent=23 // pred_region
        %s147 = smul.u32 2, %s17
        %p148 = scmp.lt.s32.totalorder %s16, 1
        %s149 = scalar_select %p148, %s16, 1
        %p150 = scmp.lt.s32.totalorder %s147, 1
        %s151 = scalar_select %p150, %s147, 1
        %s152 = smul.addr %s149, 2
        %s153 = sadd.s32 %s151, %s152
        %s154 = smul.addr %s153, 8
        %s155 = scalar_lea.vmem %s0, %s154
        %s156 = smul.u32 2, %s17
      $region28: #{tpu_custom_call.1} parent=23 // pred_fallthru
        _
    $region24: #{tpu_custom_call.1} parent=5 // pred_fallthru
      _
    %p157 = scmp.le.s32.totalorder 1, %s9
    %p158 = scmp.lt.s32.totalorder %s9, 3
    %p159 = pnand %p157, %p158
    %p160 = pneg %p159
    // Predicated region
    $region29: #{tpu_custom_call.1} parent=5 // pred_check
      _
    $region30: #{tpu_custom_call.1} parent=5 // pred_check_branch
      %162 = sbr.rel (%p159) target = $region32
    $region31: #{tpu_custom_call.1} parent=5 // pred_region
      %s163 = ssub.s32 %s9, 1
      %s164 = smul.u32 2, %s19
      %p165 = scmp.lt.s32.totalorder %s18, 1
      %s166 = scalar_select %p165, %s18, 1
      %p167 = scmp.lt.s32.totalorder %s164, 1
      %s168 = scalar_select %p167, %s164, 1
      %s169 = smul.addr %s166, 2
      %s170 = sadd.s32 %s168, %s169
      %s171 = smul.addr %s170, 8
      %s172 = scalar_lea.vmem %s0, %s171
      %p173 = pneg %p49
      %p174 = pneg %p46
      %p175 = pneg %p70
      %p176 = pneg %p67
      %p177 = pneg %p91
      %p178 = pneg %p88
      %p179 = pneg %p119
      %p180 = pneg %p116
      %s181 = smul.u32 2, %s19
      %p182 = scmp.lt.s32.totalorder %s18, 1
      %s183 = scalar_select %p182, %s18, 1
      %p184 = scmp.lt.s32.totalorder %s181, 1
      %s185 = scalar_select %p184, %s181, 1
      %s186 = smul.addr %s183, 2
      %s187 = sadd.s32 %s185, %s186
      %s188 = smul.addr %s187, 8
      %s189 = scalar_lea.vmem %s3, %s188
      %s190 = smul.u32 2, %s19
      %p191 = scmp.lt.s32.totalorder %s18, 1
      %s192 = scalar_select %p191, %s18, 1
      %p193 = scmp.lt.s32.totalorder %s190, 1
      %s194 = scalar_select %p193, %s190, 1
      %s195 = smul.addr %s192, 2
      %s196 = sadd.s32 %s194, %s195
      %s197 = smul.addr %s196, 8
      %s198 = scalar_lea.vmem %s0, %s197
      %s199 = smul.u32 2, %s19
      %s200 = smul.u32 2, %s19
      %p201 = scmp.lt.s32.totalorder %s18, 1
      %s202 = scalar_select %p201, %s18, 1
      %p203 = scmp.lt.s32.totalorder %s200, 1
      %s204 = scalar_select %p203, %s200, 1
      %s205 = smul.addr %s202, 2
      %s206 = sadd.s32 %s204, %s205
      %s207 = smul.addr %s206, 8
      %s208 = scalar_lea.vmem %s3, %s207
      %s209 = smul.u32 2, %s19
      %v210 = vld [vmem:[%s198] sm:$0x3f]
      %v211 = vld [vmem:[%s198 + $0x8] sm:$0x3f]
      %vm212 = vcmask 1045504
      %v213 = vsel %vm212, %v210, 0.0
      %v214 = vrot.slane %v213, 4
      %v215 = vadd.f32 %v213, %v214
      %v216 = vrot.slane %v215, 2
      %v217 = vadd.f32 %v215, %v216
      %v218 = vrot.slane %v217, 1
      %v219 = vadd.f32 %v217, %v218
      %v220 = vsel %vm212, %v211, 0.0
      %v221 = vrot.slane %v220, 4
      %v222 = vadd.f32 %v220, %v221
      %v223 = vrot.slane %v222, 2
      %v224 = vadd.f32 %v222, %v223
      %v225 = vrot.slane %v224, 1
      %v226 = vadd.f32 %v224, %v225
      %v227 = vrcp.pop 6.0
      %v228 = vmul.f32 %v219, %v227
      %v229 = vmul.f32 %v226, %v227
      %v230 = vsub.f32 %v210, %v228
      %v231 = vsub.f32 %v211, %v229
      %v232 = vmul.f32 %v230, %v230
      %v233 = vmul.f32 %v231, %v231
      %v234 = vsel %vm212, %v232, 0.0
      %v235 = vrot.slane %v234, 4
      %v236 = vadd.f32 %v234, %v235
      %v237 = vrot.slane %v236, 2
      %v238 = vadd.f32 %v236, %v237
      %v239 = vrot.slane %v238, 1
      %v240 = vadd.f32 %v238, %v239
      %v241 = vsel %vm212, %v233, 0.0
      %v242 = vrot.slane %v241, 4
      %v243 = vadd.f32 %v241, %v242
      %v244 = vrot.slane %v243, 2
      %v245 = vadd.f32 %v243, %v244
      %v246 = vrot.slane %v245, 1
      %v247 = vadd.f32 %v245, %v246
      %v248 = vmul.f32 %v240, %v227
      %v249 = vmul.f32 %v247, %v227
      %v250 = vadd.f32 %v248, 1e-06
      %v251 = vadd.f32 %v249, 1e-06
      %v252 = vrsqrt.pop %v250
      %v253 = vrsqrt.pop %v251
      %v254 = vmul.f32 %v230, %v252
      %v255 = vmul.f32 %v231, %v253
      %v256 = vld [vmem:[%s1] sm:$0x3f]
      %258 = vset.pattern.permute.xlu0 0
      %259 = vperm.xlu0 %258, %v256
      %v260 = vpop.permute.xlu0 %259
      %v262 = vmul.f32 %v254, %v260
      %v263 = vmul.f32 %v255, %v260
      %v264 = vld [vmem:[%s2] sm:$0x3f]
      %266 = vset.pattern.permute.xlu0 0
      %267 = vperm.xlu0 %266, %v264
      %v268 = vpop.permute.xlu0 %267
      %v270 = vadd.f32 %v262, %v268
      %v271 = vadd.f32 %v263, %v268
      %272 = vst [vmem:[%s208] sm:$0x3f] %v270
      %273 = vst [vmem:[%s208 + $0x8] sm:$0x3f] %v271
      %s274 = smul.u32 2, %s19
      %p275 = scmp.lt.s32.totalorder %s18, 1
      %s276 = scalar_select %p275, %s18, 1
      %p277 = scmp.lt.s32.totalorder %s274, 1
      %s278 = scalar_select %p277, %s274, 1
      %s279 = smul.addr %s276, 2
      %s280 = sadd.s32 %s278, %s279
      %s281 = smul.addr %s280, 8
      %s282 = scalar_lea.vmem %s3, %s281
      // Predicated region
      $region33: #{tpu_custom_call.1} parent=31 // pred_check
        %p283 = pneg %p116
      $region34: #{tpu_custom_call.1} parent=31 // pred_check_branch
        %285 = sbr.rel (%p283) target = $region36
      $region35: #{tpu_custom_call.1} parent=31 // pred_region
        %s286 = smul.u32 2, %s19
      $region36: #{tpu_custom_call.1} parent=31 // pred_fallthru
        _
    $region32: #{tpu_custom_call.1} parent=5 // pred_fallthru
      _
    %p287 = scmp.le.s32.totalorder 2, %s9
    // Predicated region
    $region37: #{tpu_custom_call.1} parent=5 // pred_check
      %p288 = pneg %p287
    $region38: #{tpu_custom_call.1} parent=5 // pred_check_branch
      %290 = sbr.rel (%p288) target = $region40
    $region39: #{tpu_custom_call.1} parent=5 // pred_region
      %s291 = ssub.s32 %s9, 2
      // Predicated region
      $region41: #{tpu_custom_call.1} parent=39 // pred_check
        %p292 = pneg %p122
      $region42: #{tpu_custom_call.1} parent=39 // pred_check_branch
        %294 = sbr.rel (%p292) target = $region44
      $region43: #{tpu_custom_call.1} parent=39 // pred_region
        %s295 = smul.u32 2, %s21
        %p296 = scmp.lt.s32.totalorder %s20, 1
        %s297 = scalar_select %p296, %s20, 1
        %p298 = scmp.lt.s32.totalorder %s295, 1
        %s299 = scalar_select %p298, %s295, 1
        %s300 = smul.addr %s297, 2
        %s301 = sadd.s32 %s299, %s300
        %s302 = smul.addr %s301, 8
        %s303 = scalar_lea.vmem %s3, %s302
      $region44: #{tpu_custom_call.1} parent=39 // pred_fallthru
        _
    $region40: #{tpu_custom_call.1} parent=5 // pred_fallthru
      _
  $region6: #{tpu_custom_call.1} parent=0 // loop_footer
    %s13 = sadd.s32 1, %s9
  $region7: #{tpu_custom_call.1} parent=0 // loop_footer_branch
    %8 = sbr.rel target = $region3
  $region8: #{tpu_custom_call.1} parent=0 // loop_exit
    _

</llo_original>
